<compile_context>
chip_gen: v5e
topology: v5e:2x2
jax: 0.10.0
libtpu: 0.0.40
codegen_flags: <defaults>
</compile_context>

<pallas_src>
import functools
import math
from typing import Dict, List, NamedTuple, Tuple

import numpy as np

import jax
import jax.numpy as jnp
from jax.experimental import pallas as pl
from jax.experimental.pallas import tpu as pltpu


# ----------------------------------------------------------------------------
# host-side: base ("cell") anchors — identical math to PyTorch generate_anchors
# ----------------------------------------------------------------------------
def _generate_base_anchors_np(scales, aspect_ratios) -> np.ndarray:
    scales = np.asarray(scales, np.float32)
    ars = np.asarray(aspect_ratios, np.float32)
    h_ratios = np.sqrt(ars)
    w_ratios = 1.0 / h_ratios
    ws = (w_ratios[:, None] * scales[None, :]).reshape(-1)
    hs = (h_ratios[:, None] * scales[None, :]).reshape(-1)
    base = np.stack([-ws, -hs, ws, hs], axis=1) / 2.0
    return np.round(base).astype(np.float32)          # (A, 4)


# ----------------------------------------------------------------------------
# host-side baking of the fused plan
# ----------------------------------------------------------------------------
_MAX_LANES = 2048                 # cap on fused lane width
_OUT_BLOCK_TARGET = 1 << 20       # ~1 MiB output tiles (write-bound roofline)
_OUT_BLOCK_MAX = 2 << 20          # hard cap so double-buffering fits v7x VMEM
_VMEM_LIMIT = 32 * 1024 * 1024    # conservative on v5e/v6e (128 MiB) & v7x (64)


def _choose_lanes(gcd_t: int, max_lanes: int = _MAX_LANES) -> int:
    """Largest divisor of gcd_t <= max_lanes, preferring multiples of 128.

    The exact-fit constraint (lanes must divide every level's element count so
    the flat layout needs no padding / post-slice) can force a non-128
    multiple; that is still correct, only the tail vreg store is masked.
    """
    divs = set()
    i = 1
    while i * i <= gcd_t:
        if gcd_t % i == 0:
            divs.add(i)
            divs.add(gcd_t // i)
        i += 1
    divs = sorted(d for d in divs if d <= max_lanes)
    dense = [d for d in divs if d % 128 == 0]
    return dense[-1] if dense else divs[-1]


class _FusedPlan(NamedTuple):
    lanes: int
    tile_r: int
    rows: int
    nblocks: int
    n_anchors: int
    pat_idx: np.ndarray      # (nblocks,) int32 : which baked pattern per block
    h0: np.ndarray           # (nblocks,) int32 : y-row base per block
    consts_a: np.ndarray     # (P, tile_r, lanes) f32
    consts_b: np.ndarray     # (P, tile_r, lanes) f32


def _bake_fused_plan(cell_anchors, grid_sizes, strides) -> _FusedPlan:
    # Per-level flat-row constants. For the row-major (H, W, A, 4) flattening,
    #     value[h, e] = ca[e] + cb[e] * h
    # with ca[e] = base[a, c] + shift_x(w) * (c in {0,2})
    #      cb[e] = stride_h    *              (c in {1,3})   (stride baked in)
    levels = []
    for base, gsz, stride in zip(cell_anchors, grid_sizes, strides):
        gh, gw = int(gsz[0]), int(gsz[1])
        sh, sw = int(stride[0]), int(stride[1])
        num_a = int(base.shape[0])
        e_w = gw * num_a * 4
        t_l = gh * e_w
        xw = np.arange(gw, dtype=np.float32) * np.float32(sw)
        xmask = np.array([1.0, 0.0, 1.0, 0.0], np.float32)
        ymask = np.array([0.0, 1.0, 0.0, 1.0], np.float32)
        ca = (xw[:, None, None] * xmask[None, None, :]
              + base[None, :, :]).reshape(e_w).astype(np.float32)
        cb = np.tile(ymask * np.float32(sh), gw * num_a).astype(np.float32)
        levels.append(dict(gh=gh, e=e_w, t=t_l, ca=ca, cb=cb))

    n_elems = int(sum(lv["t"] for lv in levels))
    n_anchors = n_elems // 4
    gcd_t = functools.reduce(math.gcd, [lv["t"] for lv in levels])
    lanes = _choose_lanes(gcd_t)             # divides every level => exact fit
    rows = n_elems // lanes

    # tile_r: multiple of 8 (sublane tiling) and, for each level we manage to
    # keep "patterned", a multiple of e_l/gcd(e_l, lanes) so a block always
    # covers whole grid rows of that level (big levels get priority).
    tile_r = 8
    for lv in sorted(levels, key=lambda d: -d["t"]):
        need = lv["e"] // math.gcd(lv["e"], lanes)
        cand = tile_r * need // math.gcd(tile_r, need)          # lcm
        if cand * lanes * 4 <= _OUT_BLOCK_MAX:
            tile_r = cand
    if rows <= tile_r:
        tile_r = rows                          # single block == full array dims
    else:
        mult_budget = max(1, _OUT_BLOCK_TARGET // (tile_r * lanes * 4))
        mult_parallel = max(1, rows // (2 * tile_r))   # >=2 blocks (v7x megacore)
        tile_r *= max(1, min(mult_budget, mult_parallel))
    nblocks = -(-rows // tile_r)
    chunk = tile_r * lanes

    starts = np.concatenate(
        [[0], np.cumsum([lv["t"] for lv in levels])]).astype(np.int64)

    def level_values(li, p_lo, p_hi):
        lv = levels[li]
        p = np.arange(p_lo, p_hi, dtype=np.int64)
        e = p % lv["e"]
        hh = (p // lv["e"]).astype(np.float32)
        return lv["ca"][e] + lv["cb"][e] * hh

    patterns_a, patterns_b = [], []
    level_pattern = {}                     # level idx -> (pattern idx, phase)
    pat_idx = np.zeros(nblocks, np.int32)
    h0 = np.zeros(nblocks, np.int32)
    for m in range(nblocks):
        lo, hi = m * chunk, (m + 1) * chunk
        li = None
        for i in range(len(levels)):
            if starts[i] <= lo and hi <= starts[i + 1]:
                li = i
                break
        if li is not None and chunk % levels[li]["e"] == 0:
            # pure, patterned block: shared per-level pattern + scalar h0
            lv = levels[li]
            p0 = int(lo - starts[li])
            rho = p0 % lv["e"]
            if li not in level_pattern:
                t = np.arange(chunk, dtype=np.int64)
                e = (rho + t) % lv["e"]
                hh = ((rho + t) // lv["e"]).astype(np.float32)
                patterns_a.append((lv["ca"][e] + lv["cb"][e] * hh).astype(np.float32))
                patterns_b.append(lv["cb"][e].astype(np.float32))
                level_pattern[li] = (len(patterns_a) - 1, rho)
            idx, rho0 = level_pattern[li]
            assert rho == rho0     # all pure blocks of a level share the phase
            pat_idx[m] = idx
            h0[m] = p0 // lv["e"]
        else:
            # block spans a level boundary / unpatterned level / ragged tail:
            # bake values directly (only a handful of such blocks).
            a = np.zeros(chunk, np.float32)
            g = lo
            while g < min(hi, n_elems):
                i = int(np.searchsorted(starts, g, side="right") - 1)
                seg_hi = int(min(hi, n_elems, starts[i + 1]))
                a[g - lo: seg_hi - lo] = level_values(
                    i, int(g - starts[i]), int(seg_hi - starts[i]))
                g = seg_hi
            pat_idx[m] = len(patterns_a)
            patterns_a.append(a)
            patterns_b.append(np.zeros(chunk, np.float32))
            h0[m] = 0

    consts_a = np.stack(patterns_a).reshape(len(patterns_a), tile_r, lanes)
    consts_b = np.stack(patterns_b).reshape(len(patterns_b), tile_r, lanes)
    return _FusedPlan(lanes, tile_r, rows, nblocks, n_anchors,
                      pat_idx, h0, consts_a, consts_b)


# ----------------------------------------------------------------------------
# Pallas kernel: one scalar-broadcast FMA per output block.
#   out_block = A_pattern + B_pattern * h0(block)
# Pattern selection and h0 come from scalar-prefetched SMEM arrays.
# ----------------------------------------------------------------------------
def _fused_anchor_kernel(pat_ref, h0_ref, ca_ref, cb_ref, out_ref):
    b = pl.program_id(0)
    shift_y_rows = h0_ref[b].astype(jnp.float32)
    out_ref[...] = ca_ref[0] + cb_ref[0] * shift_y_rows


def _fused_grid_anchors(cell_anchors, grid_sizes, strides) -> jnp.ndarray:
    plan = _bake_fused_plan(cell_anchors, grid_sizes, strides)
    tile_r, lanes = plan.tile_r, plan.lanes

    call = pl.pallas_call(
        _fused_anchor_kernel,
        out_shape=jax.ShapeDtypeStruct((plan.rows, lanes), jnp.float32),
        grid_spec=pltpu.PrefetchScalarGridSpec(
            num_scalar_prefetch=2,
            grid=(plan.nblocks,),
            in_specs=[
                pl.BlockSpec((1, tile_r, lanes),
                             lambda b, pat, h0: (pat[b], 0, 0)),
                pl.BlockSpec((1, tile_r, lanes),
                             lambda b, pat, h0: (pat[b], 0, 0)),
            ],
            out_specs=pl.BlockSpec((tile_r, lanes), lambda b, pat, h0: (b, 0)),
        ),
        compiler_params=pltpu.CompilerParams(
            dimension_semantics=("parallel",),
            vmem_limit_bytes=_VMEM_LIMIT),
    )

    @jax.jit
    def build(pat_idx, h0, ca, cb):
        flat = call(pat_idx, h0, ca, cb)
        # row-major reshape to the PyTorch (sum_l H*W*A, 4) layout — a bitcast,
        # no copy, no concatenate.
        return flat.reshape(plan.n_anchors, 4)

    return build(plan.pat_idx, plan.h0, plan.consts_a, plan.consts_b)


# ----------------------------------------------------------------------------
# Module-equivalent wrapper
# ----------------------------------------------------------------------------
class ImageList(NamedTuple):
    tensors: jnp.ndarray                      # (N, C, H, W)
    image_sizes: List[Tuple[int, int]]        # per-image (h, w)


class AnchorsGenerator:
    def __init__(self, sizes=(128, 256, 512), aspect_ratios=(0.5, 1.0, 2.0)):
        if not isinstance(sizes[0], (list, tuple)):
            sizes = tuple((s,) for s in sizes)
        if not isinstance(aspect_ratios[0], (list, tuple)):
            aspect_ratios = (aspect_ratios,) * len(sizes)
        assert len(sizes) == len(aspect_ratios)
        self.sizes = sizes
        self.aspect_ratios = aspect_ratios
        self.cell_anchors = None              # list of np.ndarray (A, 4), f32
        self._cache: Dict[str, jnp.ndarray] = {}
        self._cache_max = 32                  # bounded (reviewer concern)

    def set_cell_anchors(self):
        if self.cell_anchors is not None:
            return
        self.cell_anchors = [
            _generate_base_anchors_np(s, a)
            for s, a in zip(self.sizes, self.aspect_ratios)
        ]

    def num_anchors_per_location(self):
        return [len(s) * len(a) for s, a in zip(self.sizes, self.aspect_ratios)]

    def cached_grid_anchors(self, grid_sizes, strides) -> jnp.ndarray:
        key = str(grid_sizes) + str(strides)
        if key in self._cache:
            return self._cache[key]
        anchors = _fused_grid_anchors(self.cell_anchors, grid_sizes, strides)
        if len(self._cache) >= self._cache_max:
            self._cache.clear()
        self._cache[key] = anchors
        return anchors

    def __call__(self, image_list: ImageList, feature_maps: List[jnp.ndarray]):
        grid_sizes = [tuple(int(d) for d in fm.shape[-2:]) for fm in feature_maps]
        image_size = image_list.tensors.shape[-2:]
        strides = [(int(image_size[0]) // g[0], int(image_size[1]) // g[1])
                   for g in grid_sizes]
        self.set_cell_anchors()
        all_levels = self.cached_grid_anchors(grid_sizes, strides)
        # same anchors for every image — reuse the same cached array
        return [all_levels for _ in image_list.image_sizes]


# ----------------------------------------------------------------------------
# numpy reference (mirrors the PyTorch module) for correctness checks
# ----------------------------------------------------------------------------
def _reference_anchors(sizes, aspect_ratios, grid_sizes, strides):
    per_level = []
    for sz, ars, gsize, stride in zip(sizes, aspect_ratios, grid_sizes, strides):
        base = _generate_base_anchors_np(sz, ars)
        gh, gw = gsize
        sh, sw = stride
        sx = np.arange(0, gw, dtype=np.float32) * sw
        sy = np.arange(0, gh, dtype=np.float32) * sh
        yy, xx = np.meshgrid(sy, sx, indexing="ij")
        shifts = np.stack([xx.reshape(-1), yy.reshape(-1),
                           xx.reshape(-1), yy.reshape(-1)], axis=1)
        per_level.append((shifts[:, None, :] + base[None, :, :]).reshape(-1, 4))
    return np.concatenate(per_level, axis=0)


if __name__ == "__main__":
    key = jax.random.PRNGKey(0)
    k0, k1, k2, k3 = jax.random.split(key, 4)

    # ---- test 1: batch=2, image 64x64, 3 FPN-like levels (16, 8, 4) --------
    images = jax.random.normal(k0, (2, 3, 64, 64), dtype=jnp.float32)
    image_list = ImageList(tensors=images, image_sizes=[(60, 62), (64, 64)])
    feature_maps = [
        jax.random.normal(k1, (2, 4, 16, 16), dtype=jnp.float32),
        jax.random.normal(k2, (2, 4, 8, 8), dtype=jnp.float32),
        jax.random.normal(k3, (2, 4, 4, 4), dtype=jnp.float32),
    ]
    gen = AnchorsGenerator(sizes=(128, 256, 512), aspect_ratios=(0.5, 1.0, 2.0))
    anchors = gen(image_list, feature_maps)
    anchors = [jax.block_until_ready(a) for a in anchors]

    expected_n = sum(fm.shape[-2] * fm.shape[-1] * 3 for fm in feature_maps)
    assert len(anchors) == len(image_list.image_sizes)
    assert all(a.shape == (expected_n, 4) for a in anchors)

    grid_sizes = [tuple(fm.shape[-2:]) for fm in feature_maps]
    strides = [(64 // g[0], 64 // g[1]) for g in grid_sizes]
    ref = _reference_anchors(gen.sizes, gen.aspect_ratios, grid_sizes, strides)
    np.testing.assert_allclose(np.asarray(anchors[0]), ref, atol=1e-5, rtol=0)
    np.testing.assert_allclose(np.asarray(anchors[1]), ref, atol=1e-5, rtol=0)

    # cache hit: same (already computed) array object is reused
    anchors2 = gen(image_list, feature_maps)
    assert anchors2[0] is anchors[0]

    # ---- test 2: non-power-of-2 levels, per-level anchor counts, ragged ----
    # exercises patterned blocks with h0>0, a fully-baked boundary block and a
    # ragged last row-block (reviewer correctness concern).
    images_b = jax.random.normal(k0, (2, 3, 120, 120), dtype=jnp.float32)
    image_list_b = ImageList(tensors=images_b, image_sizes=[(120, 120)] * 2)
    feature_maps_b = [
        jax.random.normal(k1, (2, 4, 30, 30), dtype=jnp.float32),
        jax.random.normal(k2, (2, 4, 15, 15), dtype=jnp.float32),
        jax.random.normal(k3, (2, 4, 6, 6), dtype=jnp.float32),
    ]
    gen_b = AnchorsGenerator(sizes=((32, 64), (128,), (256,)),
                             aspect_ratios=((0.5, 1.0), (0.5, 1.0, 2.0), (1.0,)))
    anchors_b = gen_b(image_list_b, feature_maps_b)
    anchors_b = [jax.block_until_ready(a) for a in anchors_b]

    grid_sizes_b = [tuple(fm.shape[-2:]) for fm in feature_maps_b]
    strides_b = [(120 // g[0], 120 // g[1]) for g in grid_sizes_b]
    ref_b = _reference_anchors(gen_b.sizes, gen_b.aspect_ratios,
                               grid_sizes_b, strides_b)
    assert anchors_b[0].shape == ref_b.shape
    np.testing.assert_allclose(np.asarray(anchors_b[0]), ref_b, atol=1e-5, rtol=0)

    print("KERNEL_OK")
</pallas_src>

<mosaic_0001>
module attributes {stable_mosaic.version = 11 : i64} {
  func.func @_fused_anchor_kernel(%arg0: i32, %arg1: memref<3xi32, #tpu.memory_space<smem>>, %arg2: memref<3xi32, #tpu.memory_space<smem>>, %arg3: memref<1x8x192xf32, #tpu.memory_space<vmem>>, %arg4: memref<1x8x192xf32, #tpu.memory_space<vmem>>, %arg5: memref<8x192xf32, #tpu.memory_space<vmem>>) attributes {dimension_semantics = [#tpu.dimension_semantics<parallel>], iteration_bounds = array<i64: 3>, scalar_prefetch = 2 : i64, scratch_operands = 0 : i64, tpu.core_type = #tpu.core_type<tc>, window_params = [{transform_indices = @transform_0, window_bounds = array<i64: 1, 8, 192>}, {transform_indices = @transform_1, window_bounds = array<i64: 1, 8, 192>}, {transform_indices = @transform_2, window_bounds = array<i64: 8, 192>}]} {
    %0 = arith.index_cast %arg0 : i32 to index
    %1 = memref.load %arg2[%0] : memref<3xi32, #tpu.memory_space<smem>>
    %2 = arith.sitofp %1 : i32 to f32
    %c0 = arith.constant 0 : index
    %c0_0 = arith.constant 0 : index
    %c0_1 = arith.constant 0 : index
    %3 = vector.load %arg3[%c0, %c0_0, %c0_1] : memref<1x8x192xf32, #tpu.memory_space<vmem>>, vector<1x8x192xf32>
    %4 = vector.shape_cast %3 : vector<1x8x192xf32> to vector<8x192xf32>
    %c0_2 = arith.constant 0 : index
    %c0_3 = arith.constant 0 : index
    %c0_4 = arith.constant 0 : index
    %5 = vector.load %arg4[%c0_2, %c0_3, %c0_4] : memref<1x8x192xf32, #tpu.memory_space<vmem>>, vector<1x8x192xf32>
    %6 = vector.shape_cast %5 : vector<1x8x192xf32> to vector<8x192xf32>
    %7 = vector.broadcast %2 : f32 to vector<8x192xf32>
    %8 = arith.mulf %6, %7 : vector<8x192xf32>
    %9 = arith.addf %4, %8 : vector<8x192xf32>
    %c0_5 = arith.constant 0 : index
    %c0_6 = arith.constant 0 : index
    %10 = vector.load %arg5[%c0_5, %c0_6] : memref<8x192xf32, #tpu.memory_space<vmem>>, vector<8x192xf32>
    tpu.vector_store %arg5[%c0_5, %c0_6], %9 {strides = array<i32>} : memref<8x192xf32, #tpu.memory_space<vmem>>, vector<8x192xf32>,
    return
  }
  func.func @transform_0(%arg0: i32, %arg1: memref<3xi32, #tpu.memory_space<smem>>, %arg2: memref<3xi32, #tpu.memory_space<smem>>) -> (i32, i32, i32) {
    %0 = arith.index_cast %arg0 : i32 to index
    %1 = memref.load %arg1[%0] : memref<3xi32, #tpu.memory_space<smem>>
    %c0_i32 = arith.constant 0 : i32
    %c0_i32_0 = arith.constant 0 : i32
    %c0_i32_1 = arith.constant 0 : i32
    return %1, %c0_i32, %c0_i32_0 : i32, i32, i32
  }
  func.func @transform_1(%arg0: i32, %arg1: memref<3xi32, #tpu.memory_space<smem>>, %arg2: memref<3xi32, #tpu.memory_space<smem>>) -> (i32, i32, i32) {
    %0 = arith.index_cast %arg0 : i32 to index
    %1 = memref.load %arg1[%0] : memref<3xi32, #tpu.memory_space<smem>>
    %c0_i32 = arith.constant 0 : i32
    %c0_i32_0 = arith.constant 0 : i32
    %c0_i32_1 = arith.constant 0 : i32
    return %1, %c0_i32, %c0_i32_0 : i32, i32, i32
  }
  func.func @transform_2(%arg0: i32, %arg1: memref<3xi32, #tpu.memory_space<smem>>, %arg2: memref<3xi32, #tpu.memory_space<smem>>) -> (i32, i32) {
    %c0_i32 = arith.constant 0 : i32
    %c0_i32_0 = arith.constant 0 : i32
    return %arg0, %c0_i32 : i32, i32
  }
}

</mosaic_0001>

<llo_original>
// kernel: build.1
$region0: #{build.1}
  #allocation0 [shape = 'u32[]', space=smem, size = 0x4, offset = 0x4, fixed_abs, tag = 'smem constant byte address 0x4 - core index']
  #allocation1 [shape = 'u32[72,128]{1,0:T(1,128)}', space=vmem, size = 0x9000, scoped, tag = 'internal scratch']
  #allocation2 [shape = 's32[1]{0}', space=sflag, size = 0x4, scoped, tag = 'scoped memory for build.1']
  #allocation3 [shape = 'u8[512]{0}', space=smem, size = 0x200, scoped, tag = 'prefetched SMEM operand 0']
  #allocation4 [shape = 'u8[512]{0}', space=smem, size = 0x200, scoped, tag = 'prefetched SMEM operand 1']
  %s0 = inlined_call_operand.hbm [shape: s32[3], index: 0, kind: input, shape index: {}]
  %s1 = inlined_call_operand.hbm [shape: s32[3], index: 1, kind: input, shape index: {}]
  %s2 = inlined_call_operand.hbm [shape: f32[2,8,192], index: 2, kind: input, shape index: {}]
  %s3 = inlined_call_operand.hbm [shape: f32[2,8,192], index: 3, kind: input, shape index: {}]
  %s4 = inlined_call_operand.vmem [shape: f32[21,192], index: 4, kind: output, shape index: {}]
  %s5 = sld [smem:[#allocation0]]
  $region49: #{build.1} parent=0
    _
  %s7 = ssub.s32 1, %s5
  %s8 = scalar_select 0, %s7, %s5
  %s10 = sshll.u32 %s0, 4
  %s11 = int_to_ptr.hbm [resolvable:$true] %s10
  %13 = dma.hbm_to_smem %s11, 16, [#allocation3], [#allocation2]
  %s15 = sshll.u32 %s1, 4
  %s16 = int_to_ptr.hbm [resolvable:$true] %s15
  %18 = dma.hbm_to_smem %s16, 16, [#allocation4], [#allocation2]
  %20 = dma.done [#allocation2], 32
  %21 = sfence
  $region1: #{build.1} parent=0
    #allocation5 [shape = 'u8[16384]{0}', space=vmem, size = 0x4000, scoped, tag = 'input window, operand 2']
    #allocation6 [shape = 's32[2]{0}', space=sflag, size = 0x8, scoped, tag = 'scoped memory for build.1']
    #allocation7 [shape = 'u8[16384]{0}', space=vmem, size = 0x4000, scoped, tag = 'input window, operand 3']
    #allocation8 [shape = 's32[2]{0}', space=sflag, size = 0x8, scoped, tag = 'scoped memory for build.1']
    %22 = vsyncpa [#allocation6], 0
    %s23 = scalar_lea.sflag [#allocation6], 1
    %24 = vsyncpa %s23, 0
    %25 = vsyncpa [#allocation8], 0
    %s26 = scalar_lea.sflag [#allocation8], 1
    %27 = vsyncpa %s26, 0
    loop: start=0, step=1, limit=5
    $region2: #{build.1} parent=1 // loop_pre_header
      _
    $region3: #{build.1} parent=1 // loop_header
      %s29 = sphi 0, %s33
      %p30 = scmp.ge.s32.totalorder %s29, 5
      %s41 = sphi 0, %s43
      %s44 = sphi 0, %s41
      %s45 = sphi 0, %s44
      %s61 = sphi 0, %s45
      %s69 = sphi 0, %s71
      %s72 = sphi 0, %s69
      %s73 = sphi 0, %s72
      %s89 = sphi 0, %s73
      %s95 = sphi 0, %s97
      %s98 = sphi 0, %s95
      %s99 = sphi 0, %s98
      %s115 = sphi 0, %s99
    $region4: #{build.1} parent=1 // loop_header_branch
      %32 = sbr.rel (%p30) target = $region8
    $region5: #{build.1} parent=1 // loop_body
      %s34 = ssub.s32 %s29, 1
      %s35 = ssub.s32 %s29, 2
      %s36 = sadd.s32 %s29, 1
      %s37 = sld [smem:[#allocation3 + %s29]]
      %s38 = sld [smem:[#allocation3 + %s36]]
      %s39 = ssub.s32 %s37, %s38
      %p40 = scmp.eq.s32.totalorder %s39, 0
      %s42 = sadd.s32 %s41, 1
      %s43 = scalar_select %p40, %s41, %s42
      %p46 = pneg %p40
      %p47 = scmp.eq.s32.totalorder %s29, 2
      %p48 = por %p46, %p47
      %p49 = scmp.ne.s32.totalorder %s41, %s44
      %p50 = scmp.eq.s32.totalorder %s29, 0
      %p51 = por %p49, %p50
      %p52 = scmp.ne.s32.totalorder %s41, %s44
      %p53 = scmp.eq.s32.totalorder %s34, 2
      %p54 = por %p52, %p53
      %p55 = scmp.ne.s32.totalorder %s44, %s45
      %p56 = scmp.eq.s32.totalorder %s34, 0
      %p57 = por %p55, %p56
      %p58 = scmp.ne.s32.totalorder %s44, %s45
      %p59 = scmp.eq.s32.totalorder %s35, 2
      %p60 = por %p58, %p59
      %p62 = scmp.ne.s32.totalorder %s45, %s61
      %p63 = scmp.eq.s32.totalorder %s35, 0
      %p64 = por %p62, %p63
      %s65 = sld [smem:[#allocation3 + %s29]]
      %s66 = sld [smem:[#allocation3 + %s36]]
      %s67 = ssub.s32 %s65, %s66
      %p68 = scmp.eq.s32.totalorder %s67, 0
      %s70 = sadd.s32 %s69, 1
      %s71 = scalar_select %p68, %s69, %s70
      %p74 = pneg %p68
      %p75 = scmp.eq.s32.totalorder %s29, 2
      %p76 = por %p74, %p75
      %p77 = scmp.ne.s32.totalorder %s69, %s72
      %p78 = scmp.eq.s32.totalorder %s29, 0
      %p79 = por %p77, %p78
      %p80 = scmp.ne.s32.totalorder %s69, %s72
      %p81 = scmp.eq.s32.totalorder %s34, 2
      %p82 = por %p80, %p81
      %p83 = scmp.ne.s32.totalorder %s72, %s73
      %p84 = scmp.eq.s32.totalorder %s34, 0
      %p85 = por %p83, %p84
      %p86 = scmp.ne.s32.totalorder %s72, %s73
      %p87 = scmp.eq.s32.totalorder %s35, 2
      %p88 = por %p86, %p87
      %p90 = scmp.ne.s32.totalorder %s73, %s89
      %p91 = scmp.eq.s32.totalorder %s35, 0
      %p92 = por %p90, %p91
      %s93 = ssub.s32 %s29, %s36
      %p94 = scmp.eq.s32.totalorder %s93, 0
      %s96 = sadd.s32 %s95, 1
      %s97 = scalar_select %p94, %s95, %s96
      %p100 = pneg %p94
      %p101 = scmp.eq.s32.totalorder %s29, 2
      %p102 = por %p100, %p101
      %p103 = scmp.ne.s32.totalorder %s95, %s98
      %p104 = scmp.eq.s32.totalorder %s29, 0
      %p105 = por %p103, %p104
      %p106 = scmp.ne.s32.totalorder %s95, %s98
      %p107 = scmp.eq.s32.totalorder %s34, 2
      %p108 = por %p106, %p107
      %p109 = scmp.ne.s32.totalorder %s98, %s99
      %p110 = scmp.eq.s32.totalorder %s34, 0
      %p111 = por %p109, %p110
      %p112 = scmp.ne.s32.totalorder %s98, %s99
      %p113 = scmp.eq.s32.totalorder %s35, 2
      %p114 = por %p112, %p113
      %p116 = scmp.ne.s32.totalorder %s99, %s115
      %p117 = scmp.eq.s32.totalorder %s35, 0
      %p118 = por %p116, %p117
      %p119 = scmp.le.s32.totalorder 1, %s29
      %p120 = scmp.lt.s32.totalorder %s29, 4
      %p121 = pnand %p119, %p120
      %p122 = pneg %p121
      // Predicated region
      $region9: #{build.1} parent=5 // pred_check
        _
      $region10: #{build.1} parent=5 // pred_check_branch
        %124 = sbr.rel (%p121) target = $region12
      $region11: #{build.1} parent=5 // pred_region
        %s125 = ssub.s32 %s29, 1
      $region12: #{build.1} parent=5 // pred_fallthru
        _
      %p126 = scmp.lt.s32.totalorder %s29, 3
      // Predicated region
      $region13: #{build.1} parent=5 // pred_check
        %p127 = pneg %p126
      $region14: #{build.1} parent=5 // pred_check_branch
        %129 = sbr.rel (%p127) target = $region16
      $region15: #{build.1} parent=5 // pred_region
        // Predicated region
        $region17: #{build.1} parent=15 // pred_check
          %p130 = pneg %p51
        $region18: #{build.1} parent=15 // pred_check_branch
          %132 = sbr.rel (%p130) target = $region20
        $region19: #{build.1} parent=15 // pred_region
          %s133 = sand.u32 %s41, 1
          %s134 = scalar_lea.sflag [#allocation6], %s133
          %s135 = sand.u32 %s41, 1
          %s136 = smul.addr %s135, 16
          %s137 = scalar_lea.vmem [#allocation5], %s136
          %s138 = sld [smem:[#allocation3 + %s29]]
          %140 = vsyncadd %s134, 0
          %s141 = smul.addr %s138, 2
          %s142 = smul.addr %s141, 8
          %s143 = scalar_lea.hbm %s2, %s142
          %s145 = sshll.u32 %s143, 4
          %s146 = int_to_ptr.hbm [resolvable:$true] %s145
          %s147 = sshll.u32 %s137, 4
          %s148 = int_to_ptr.vmem [resolvable:$true] %s147
          %150 = dma.hbm_to_vmem [thread:$0]  %s146, 256, %s148, %s134
        $region20: #{build.1} parent=15 // pred_fallthru
          _
        // Predicated region
        $region21: #{build.1} parent=15 // pred_check
          %p151 = pneg %p79
        $region22: #{build.1} parent=15 // pred_check_branch
          %153 = sbr.rel (%p151) target = $region24
        $region23: #{build.1} parent=15 // pred_region
          %s154 = sand.u32 %s69, 1
          %s155 = scalar_lea.sflag [#allocation8], %s154
          %s156 = sand.u32 %s69, 1
          %s157 = smul.addr %s156, 16
          %s158 = scalar_lea.vmem [#allocation7], %s157
          %s159 = sld [smem:[#allocation3 + %s29]]
          %161 = vsyncadd %s155, 0
          %s162 = smul.addr %s159, 2
          %s163 = smul.addr %s162, 8
          %s164 = scalar_lea.hbm %s3, %s163
          %s166 = sshll.u32 %s164, 4
          %s167 = int_to_ptr.hbm [resolvable:$true] %s166
          %s168 = sshll.u32 %s158, 4
          %s169 = int_to_ptr.vmem [resolvable:$true] %s168
          %171 = dma.hbm_to_vmem [thread:$0]  %s167, 256, %s169, %s155
        $region24: #{build.1} parent=15 // pred_fallthru
          _
      $region16: #{build.1} parent=5 // pred_fallthru
        _
      %p172 = scmp.le.s32.totalorder 1, %s29
      %p173 = scmp.lt.s32.totalorder %s29, 4
      %p174 = pnand %p172, %p173
      %p175 = pneg %p174
      // Predicated region
      $region25: #{build.1} parent=5 // pred_check
        _
      $region26: #{build.1} parent=5 // pred_check_branch
        %177 = sbr.rel (%p174) target = $region28
      $region27: #{build.1} parent=5 // pred_region
        %s178 = ssub.s32 %s29, 1
        %s179 = sand.u32 %s44, 1
        %s180 = scalar_lea.sflag [#allocation6], %s179
        %s181 = sand.u32 %s44, 1
        %s182 = smul.addr %s181, 16
        %s183 = scalar_lea.vmem [#allocation5], %s182
        // Predicated region
        $region29: #{build.1} parent=27 // pred_check
          %p184 = pneg %p57
        $region30: #{build.1} parent=27 // pred_check_branch
          %186 = sbr.rel (%p184) target = $region32
        $region31: #{build.1} parent=27 // pred_region
          %188 = dma.done %s180, 256
        $region32: #{build.1} parent=27 // pred_fallthru
          _
        %s189 = sand.u32 %s72, 1
        %s190 = scalar_lea.sflag [#allocation8], %s189
        %s191 = sand.u32 %s72, 1
        %s192 = smul.addr %s191, 16
        %s193 = scalar_lea.vmem [#allocation7], %s192
        // Predicated region
        $region33: #{build.1} parent=27 // pred_check
          %p194 = pneg %p85
        $region34: #{build.1} parent=27 // pred_check_branch
          %196 = sbr.rel (%p194) target = $region36
        $region35: #{build.1} parent=27 // pred_region
          %198 = dma.done %s190, 256
        $region36: #{build.1} parent=27 // pred_fallthru
          _
        %s199 = sand.u32 %s44, 1
        %s200 = scalar_lea.sflag [#allocation6], %s199
        %s201 = sand.u32 %s44, 1
        %s202 = smul.addr %s201, 16
        %s203 = scalar_lea.vmem [#allocation5], %s202
        %p204 = pneg %p57
        %p205 = pneg %p54
        %s206 = sand.u32 %s72, 1
        %s207 = scalar_lea.sflag [#allocation8], %s206
        %s208 = sand.u32 %s72, 1
        %s209 = smul.addr %s208, 16
        %s210 = scalar_lea.vmem [#allocation7], %s209
        %p211 = pneg %p85
        %p212 = pneg %p82
        %p213 = pneg %p111
        %p214 = pneg %p108
        %p215 = scmp.lt.s32.totalorder %s34, 2
        %s216 = scalar_select %p215, %s34, 2
        %s217 = smul.addr %s216, 2
        %s218 = smul.addr %s217, 8
        %s219 = scalar_lea.vmem %s4, %s218
        %s220 = sld [smem:[#allocation3 + %s34]]
        %s221 = sld [smem:[#allocation3 + %s34]]
        %p222 = scmp.lt.s32.totalorder %s34, 2
        %s223 = scalar_select %p222, %s34, 2
        %s224 = smul.addr %s223, 2
        %s225 = smul.addr %s224, 8
        %s226 = scalar_lea.vmem %s4, %s225
        %s227 = sld [smem:[#allocation4 + %s34]]
        %s228 = scvt.s32.f32 %s227
        %v229 = vld [vmem:[%s183] sm:$0xff]
        %v230 = vld [vmem:[%s183 + $0x8] sm:$0xff]
        %v231 = vld [vmem:[%s193] sm:$0xff]
        %v232 = vld [vmem:[%s193 + $0x8] sm:$0xff]
        %v233 = vstv %s228
        %v234 = vmul.f32 %v231, %v233
        %v235 = vmul.f32 %v232, %v233
        %v236 = vadd.f32 %v229, %v234
        %v237 = vadd.f32 %v230, %v235
        %238 = vst [vmem:[%s226] sm:$0xff] %v236
        %vm239 = vcmask 523264
        %240 = vst.msk [vmem:[%s226 + $0x8] sm:$0xff] %vm239, %v237
        %p241 = scmp.lt.s32.totalorder %s34, 2
        %s242 = scalar_select %p241, %s34, 2
        %s243 = smul.addr %s242, 2
        %s244 = smul.addr %s243, 8
        %s245 = scalar_lea.vmem %s4, %s244
        // Predicated region
        $region37: #{build.1} parent=27 // pred_check
          %p246 = pneg %p108
        $region38: #{build.1} parent=27 // pred_check_branch
          %248 = sbr.rel (%p246) target = $region40
        $region39: #{build.1} parent=27 // pred_region
          _
        $region40: #{build.1} parent=27 // pred_fallthru
          _
      $region28: #{build.1} parent=5 // pred_fallthru
        _
      %p249 = scmp.le.s32.totalorder 2, %s29
      // Predicated region
      $region41: #{build.1} parent=5 // pred_check
        %p250 = pneg %p249
      $region42: #{build.1} parent=5 // pred_check_branch
        %252 = sbr.rel (%p250) target = $region44
      $region43: #{build.1} parent=5 // pred_region
        %s253 = ssub.s32 %s29, 2
        // Predicated region
        $region45: #{build.1} parent=43 // pred_check
          %p254 = pneg %p114
        $region46: #{build.1} parent=43 // pred_check_branch
          %256 = sbr.rel (%p254) target = $region48
        $region47: #{build.1} parent=43 // pred_region
          %p257 = scmp.lt.s32.totalorder %s35, 2
          %s258 = scalar_select %p257, %s35, 2
          %s259 = smul.addr %s258, 2
          %s260 = smul.addr %s259, 8
          %s261 = scalar_lea.vmem %s4, %s260
        $region48: #{build.1} parent=43 // pred_fallthru
          _
      $region44: #{build.1} parent=5 // pred_fallthru
        _
    $region6: #{build.1} parent=1 // loop_footer
      %s33 = sadd.s32 1, %s29
    $region7: #{build.1} parent=1 // loop_footer_branch
      %28 = sbr.rel target = $region3
    $region8: #{build.1} parent=1 // loop_exit
      _
    %262 = vsyncpa [#allocation6], 1
    %s263 = scalar_lea.sflag [#allocation6], 1
    %264 = vsyncpa %s263, 1
    %265 = vsyncpa [#allocation8], 1
    %s266 = scalar_lea.sflag [#allocation8], 1
    %267 = vsyncpa %s266, 1

</llo_original>
